<compile_context>
chip_gen: v7x
topology: tpu7x:2x2x1
jax: 0.10.0
libtpu: 0.0.40
codegen_flags: <defaults>
</compile_context>

<pallas_src>
import jax
import jax.numpy as jnp
from jax.experimental import pallas as pl
from jax.experimental.pallas import tpu as pltpu


def _add_one_kernel(x_ref, sum_ref):
    # Constant folded as an immediate: one vreg-load, one VPU add, one store.
    sum_ref[...] = x_ref[...] + 1.0


def add_const_return(x: jax.Array, state: jax.Array, *, donate_x: bool = False):
    """Returns (x + state, state) — mirrors ModuleAddConstReturn.forward.

    `state` is the module's frozen ones(2,2) buffer; it is folded into the
    kernel as the immediate 1.0 and passed through at the Python level
    (zero-copy).  If `state` were trainable, it would need to be a runtime
    operand instead of a folded constant.
    """
    assert x.shape == state.shape and x.dtype == state.dtype
    # Tiny (2, 2) array: full-array block (block_shape == array dims)
    # satisfies the TPU tiling rule without padding to (8, 128).
    full_spec = pl.BlockSpec(x.shape, lambda: (0, 0))
    kwargs = {}
    if donate_x:
        # Only safe if the caller does not read x after this call.
        kwargs["input_output_aliases"] = {0: 0}
    out_sum = pl.pallas_call(
        _add_one_kernel,
        out_shape=jax.ShapeDtypeStruct(x.shape, x.dtype),
        in_specs=[full_spec],
        out_specs=full_spec,
        cost_estimate=pl.CostEstimate(
            flops=x.size, transcendentals=0, bytes_accessed=2 * x.size * x.dtype.itemsize
        ),
        **kwargs,
    )(x)
    # Pass-through of the constant: no kernel output, no copy.
    return out_sum, state


def add_const_return_batched(x: jax.Array, state: jax.Array):
    """Batched variant: x is (B, 2, 2); returns (x + state, state).

    Presents the data lane-dense (last dim a multiple of 128) so the output
    stores are full-width `vst` rather than masked 2-wide partial stores, and
    one pallas_call covers all B instances.
    """
    B = x.shape[0]
    assert x.shape[1:] == state.shape and x.dtype == state.dtype
    n = B * state.size
    assert n % 128 == 0, "batch must make the flat size a multiple of 128"
    # Prefer a wide lane dimension; 512 captures ~85% of HBM roofline.
    cols = 512 if n % 512 == 0 and n // 512 >= 1 else 128
    rows = n // cols
    flat = x.reshape(rows, cols)

    # Row tiling: use full-array block when small; tile in 512-row blocks
    # (double-buffered footprint stays well under every chip's scoped VMEM
    # default, including v7x's 64 MiB physical / 32 MiB scoped budget).
    if rows >= 512 and rows % 512 == 0:
        tile_r = 512
    else:
        tile_r = rows  # full extent (valid even when rows < 8)
    grid = (rows // tile_r,)

    out_flat = pl.pallas_call(
        _add_one_kernel,
        out_shape=jax.ShapeDtypeStruct((rows, cols), x.dtype),
        grid=grid,
        in_specs=[pl.BlockSpec((tile_r, cols), lambda i: (i, 0))],
        out_specs=pl.BlockSpec((tile_r, cols), lambda i: (i, 0)),
        compiler_params=pltpu.CompilerParams(
            dimension_semantics=("parallel",)  # shard grid across TCs on v7x
        ),
        cost_estimate=pl.CostEstimate(
            flops=n, transcendentals=0, bytes_accessed=2 * n * x.dtype.itemsize
        ),
    )(flat)
    return out_flat.reshape(x.shape), state


if __name__ == "__main__":
    # Deterministic parameter init, matching the module's __init__:
    # self.state = torch.ones(2, 2)
    state = jnp.ones((2, 2), dtype=jnp.float32)

    # Example input consistent with get_inputs(): shape (2, 2). Use
    # PRNGKey(0) for a deterministic (non-trivial) input.
    key = jax.random.PRNGKey(0)
    x = jax.random.normal(key, (2, 2), dtype=jnp.float32)

    # --- single-instance path (mirrors the module's forward exactly) ---
    out_sum, out_state = add_const_return(x, state)
    jax.block_until_ready((out_sum, out_state))
    assert jnp.allclose(out_sum, x + state), "sum mismatch"
    assert jnp.allclose(out_state, state), "state passthrough mismatch"

    # --- batched, lane-dense path (the regime where the kernel pays off) ---
    kb = jax.random.PRNGKey(1)
    xb = jax.random.normal(kb, (64, 2, 2), dtype=jnp.float32)  # 64*4 = 256 lanes
    out_b, out_state_b = add_const_return_batched(xb, state)
    jax.block_until_ready((out_b, out_state_b))
    assert jnp.allclose(out_b, xb + state[None]), "batched sum mismatch"
    assert jnp.allclose(out_state_b, state), "batched state passthrough mismatch"

    print("KERNEL_OK")
</pallas_src>

<mosaic_0001>
module attributes {stable_mosaic.version = 11 : i64} {
  func.func @_add_one_kernel(%arg0: memref<2x2xf32, #tpu.memory_space<vmem>>, %arg1: memref<2x2xf32, #tpu.memory_space<vmem>>) attributes {dimension_semantics = [], scalar_prefetch = 0 : i64, scratch_operands = 0 : i64, tpu.core_type = #tpu.core_type<tc>} {
    %c0 = arith.constant 0 : index
    %c0_0 = arith.constant 0 : index
    %0 = vector.load %arg0[%c0, %c0_0] : memref<2x2xf32, #tpu.memory_space<vmem>>, vector<2x2xf32>
    %cst = arith.constant 1.000000e+00 : f32
    %1 = vector.broadcast %cst : f32 to vector<2x2xf32>
    %2 = arith.addf %0, %1 : vector<2x2xf32>
    %c0_1 = arith.constant 0 : index
    %c0_2 = arith.constant 0 : index
    %3 = vector.load %arg1[%c0_1, %c0_2] : memref<2x2xf32, #tpu.memory_space<vmem>>, vector<2x2xf32>
    tpu.vector_store %arg1[%c0_1, %c0_2], %2 {strides = array<i32>} : memref<2x2xf32, #tpu.memory_space<vmem>>, vector<2x2xf32>,
    return
  }
}

</mosaic_0001>

<llo_original>
// kernel: tpu_custom_call.1
$region0: #{tpu_custom_call.1}
  #allocation0 [shape = 'u32[]', space=smem, size = 0x4, offset = 0x4, fixed_abs, tag = 'smem constant byte address 0x4 - core index']
  #allocation1 [shape = 'u32[144,128]{1,0:T(1,128)}', space=vmem, size = 0x12000, scoped, tag = 'internal scratch']
  %s0 = inlined_call_operand.hbm [shape: f32[2,2], index: 0, kind: input, shape index: {}]
  %s1 = inlined_call_operand.hbm [shape: f32[2,2], index: 1, kind: output, shape index: {}]
  %s2 = sld [smem:[#allocation0]]
  $region18: #{tpu_custom_call.1} parent=0
    _
  %s4 = ssub.s32 1, %s2
  %s5 = scalar_select 0, %s4, %s2
  $region1: #{tpu_custom_call.1} parent=0
    #allocation2 [shape = 'u8[1024]{0}', space=vmem, size = 0x400, scoped, tag = 'input window, operand 0, single buffered']
    #allocation3 [shape = 's32[1]{0}', space=sflag, size = 0x4, scoped, tag = 'scoped memory for tpu_custom_call.1']
    #allocation4 [shape = 's32[1]{0}', space=sflag, size = 0x4, scoped, tag = 'scoped memory for tpu_custom_call.1']
    #allocation5 [shape = 'u8[1024]{0}', space=vmem, size = 0x400, scoped, tag = 'output window, operand 0, single buffered']
    %6 = vsyncpa [#allocation3], 0
    %7 = vsyncpa [#allocation4], 0
    // Predicated region
    $region2: #{tpu_custom_call.1} parent=1 // pred_check
      _
    $region3: #{tpu_custom_call.1} parent=1 // pred_check_branch
      %9 = sbr.rel (0) target = $region5
    $region4: #{tpu_custom_call.1} parent=1 // pred_region
      %s11 = ssub.s32 32, 32
      %12 = vsyncadd [#allocation3], %s11
      %s14 = sshll.u32 [#allocation2], 4
      %s15 = int_to_ptr.vmem [resolvable:$true] %s14
      %17 = dma.hbm_to_vmem [thread:$0]  %s0, 32, %s15, [#allocation3]
    $region5: #{tpu_custom_call.1} parent=1 // pred_fallthru
      _
    // Predicated region
    $region6: #{tpu_custom_call.1} parent=1 // pred_check
      _
    $region7: #{tpu_custom_call.1} parent=1 // pred_check_branch
      %19 = sbr.rel (0) target = $region9
    $region8: #{tpu_custom_call.1} parent=1 // pred_region
      %20 = dma.done [#allocation3], 32
    $region9: #{tpu_custom_call.1} parent=1 // pred_fallthru
      _
    %v21 = vld [vmem:[#allocation2] sm:$0x3]
    %v22 = vadd.f32 %v21, 1.0
    %vm23 = vcmask 9216
    %24 = vst.msk [vmem:[#allocation5] sm:$0x3] %vm23, %v22
    // Predicated region
    $region10: #{tpu_custom_call.1} parent=1 // pred_check
      _
    $region11: #{tpu_custom_call.1} parent=1 // pred_check_branch
      %26 = sbr.rel (0) target = $region13
    $region12: #{tpu_custom_call.1} parent=1 // pred_region
      %s28 = ssub.s32 32, 32
      %29 = vsyncadd [#allocation4], %s28
      %s31 = sshll.u32 [#allocation5], 4
      %s32 = int_to_ptr.vmem [resolvable:$true] %s31
      %34 = dma.vmem_to_hbm [thread:$0]  %s32, 32, %s1, [#allocation4]
    $region13: #{tpu_custom_call.1} parent=1 // pred_fallthru
      _
    // Predicated region
    $region14: #{tpu_custom_call.1} parent=1 // pred_check
      _
    $region15: #{tpu_custom_call.1} parent=1 // pred_check_branch
      %36 = sbr.rel (0) target = $region17
    $region16: #{tpu_custom_call.1} parent=1 // pred_region
      %37 = dma.done [#allocation4], 32
    $region17: #{tpu_custom_call.1} parent=1 // pred_fallthru
      _
    %38 = vsyncpa [#allocation3], 1
    %39 = vsyncpa [#allocation4], 1

</llo_original>
